<compile_context>
chip_gen: v5e
topology: v5e:2x2
jax: 0.10.0
libtpu: 0.0.40
codegen_flags: <defaults>
</compile_context>

<pallas_src>
import functools

import jax
import jax.numpy as jnp
from jax.experimental import pallas as pl
from jax.experimental.pallas import tpu as pltpu


def _prelu(x, alpha):
    return jnp.where(x > 0, x, alpha * x)


def _bidfsmn_kernel(alphas_ref,       # SMEM (3,)  : [mem_alpha, fc_alpha, out_alpha]
                    x_ref,            # VMEM (1, C, To)  zero-padded input tile
                    dw_w_ref,         # VMEM (C, K)      depthwise taps (BN scale folded)
                    mem_shift_ref,    # VMEM (C, 1)      memory BN shift (folded w/ conv bias)
                    w1_ref,           # VMEM (H, C) bf16 1x1 conv C->H (BN scale folded)
                    fc_shift_ref,     # VMEM (H, 1)
                    w2_ref,           # VMEM (C, H) bf16 1x1 conv H->C (bn{opt} scale folded)
                    out_shift_ref,    # VMEM (C, 1)
                    out_ref,          # VMEM (1, C, To)
                    *, K, dilation, left, T, To):
    x = x_ref[0]                                # (C, To) f32, columns [T, To) are zero
    dw = dw_w_ref[...]                          # (C, K)  f32

    # Time index of each lane (hoisted out of the tap loop).
    C = x.shape[0]
    t_idx = jax.lax.broadcasted_iota(jnp.int32, (C, To), 1)

    # ---- depthwise "memory" conv (groups == channels) ----
    # tap k reads x[:, t + (k - left)*dilation]; shifts are done with a single
    # XLU roll of the resident tile, out-of-range columns masked to zero
    # (matches the F.pad zero halo of the reference module).
    acc = jnp.zeros_like(x)
    for k in range(K):
        s = (k - left) * dilation
        if s == 0:
            tap = x
        else:
            rolled = pltpu.roll(x, (-s) % To, axis=1)      # rolled[t] = x[(t + s) % To]
            valid = (t_idx + s >= 0) & (t_idx + s < T)
            tap = jnp.where(valid, rolled, 0.0)
        acc = acc + dw[:, k:k + 1] * tap

    a_mem = alphas_ref[0]
    a_fc = alphas_ref[1]
    a_out = alphas_ref[2]

    # BN scale already folded into dw taps; apply shift + PReLU, residual add.
    mem = _prelu(acc + mem_shift_ref[...], a_mem)
    memory_out = mem + x                                   # (C, To) f32

    # ---- fc_trans: 1x1 conv C->H, BN, PReLU, (Dropout=id), 1x1 conv H->C ----
    h = jnp.dot(w1_ref[...], memory_out.astype(jnp.bfloat16),
                preferred_element_type=jnp.float32)        # (H, To) f32 accum
    h = _prelu(h + fc_shift_ref[...], a_fc)
    y = jnp.dot(w2_ref[...], h.astype(jnp.bfloat16),
                preferred_element_type=jnp.float32)        # (C, To)

    # ---- bn{opt} (scale folded into w2) + act{opt}, second residual add ----
    y = _prelu(y + out_shift_ref[...], a_out)
    out_ref[0] = (y + memory_out).astype(out_ref.dtype)


def bidfsmn_forward(x, params, opt):
    """x: (B, C, T) float32.  params: dict of raw module parameters.  opt in [0,3]."""
    assert opt in (0, 1, 2, 3)
    eps = 1e-5
    B, C, T = x.shape
    H = params['w1'].shape[0]
    L, R, d = params['left'], params['right'], params['dilation']
    K = L + R + 1

    # Lane-dense time extent (multiple of 128); halo is handled in-kernel, so
    # this is the only wrapper-side padding (none at all if T % 128 == 0).
    To = max(128, ((T + 127) // 128) * 128)

    x32 = x.astype(jnp.float32)
    if To != T:
        x32 = jnp.pad(x32, ((0, 0), (0, 0), (0, To - T)))

    # ---- fold BatchNorms (running stats) + conv biases ----
    def fold(gamma, beta, mean, var, conv_bias):
        scale = (gamma / jnp.sqrt(var + eps)).astype(jnp.float32)
        shift = (beta + scale * (conv_bias - mean)).astype(jnp.float32)
        return scale, shift

    mem_scale, mem_shift = fold(params['mem_gamma'], params['mem_beta'],
                                params['mem_mean'], params['mem_var'], params['dw_b'])
    fc_scale, fc_shift = fold(params['fc_gamma'], params['fc_beta'],
                              params['fc_mean'], params['fc_var'], params['b1'])
    out_scale, out_shift = fold(params['bn_gamma'][opt], params['bn_beta'][opt],
                                params['bn_mean'][opt], params['bn_var'][opt], params['b2'])

    # Fold BN scales into the conv weights (keeps only shifts + PReLU in-kernel).
    dw_w = params['dw_w'][:, 0, :].astype(jnp.float32) * mem_scale[:, None]     # (C, K) f32
    w1 = (params['w1'].astype(jnp.float32) * fc_scale[:, None]).astype(jnp.bfloat16)   # (H, C)
    w2 = (params['w2'].astype(jnp.float32) * out_scale[:, None]).astype(jnp.bfloat16)  # (C, H)

    alphas = jnp.stack([params['mem_alpha'], params['fc_alpha'],
                        params['act_alpha'][opt]]).astype(jnp.float32)          # (3,)

    kernel = functools.partial(_bidfsmn_kernel, K=K, dilation=d, left=L, T=T, To=To)
    const2d = lambda shape: pl.BlockSpec(shape, lambda b: (0, 0))

    out = pl.pallas_call(
        kernel,
        out_shape=jax.ShapeDtypeStruct((B, C, To), jnp.float32),
        grid=(B,),
        in_specs=[
            pl.BlockSpec(memory_space=pltpu.SMEM),              # alphas
            pl.BlockSpec((1, C, To), lambda b: (b, 0, 0)),      # x (padded to To)
            const2d((C, K)),                                    # dw_w (scaled)
            const2d((C, 1)),                                    # mem_shift
            const2d((H, C)),                                    # w1 (bf16, scaled)
            const2d((H, 1)),                                    # fc_shift
            const2d((C, H)),                                    # w2 (bf16, scaled)
            const2d((C, 1)),                                    # out_shift
        ],
        out_specs=pl.BlockSpec((1, C, To), lambda b: (b, 0, 0)),
        compiler_params=pltpu.CompilerParams(dimension_semantics=("parallel",)),
    )(alphas, x32, dw_w, mem_shift[:, None], w1, fc_shift[:, None],
      w2, out_shift[:, None])

    return out[:, :, :T]


# ---------------------------- pure-JAX reference ----------------------------
def reference_forward(x, p, opt):
    eps = 1e-5
    L, R, d = p['left'], p['right'], p['dilation']
    C = x.shape[1]

    def bn(v, gamma, beta, mean, var):
        return (gamma[None, :, None] * (v - mean[None, :, None])
                / jnp.sqrt(var[None, :, None] + eps) + beta[None, :, None])

    def prelu(v, a):
        return jnp.where(v > 0, v, a * v)

    xpad = jnp.pad(x, ((0, 0), (0, 0), (L * d, R * d)))
    mem = jax.lax.conv_general_dilated(
        xpad, p['dw_w'], window_strides=(1,), padding='VALID',
        rhs_dilation=(d,), dimension_numbers=('NCH', 'OIH', 'NCH'),
        feature_group_count=C)
    mem = mem + p['dw_b'][None, :, None]
    mem = prelu(bn(mem, p['mem_gamma'], p['mem_beta'], p['mem_mean'], p['mem_var']),
                p['mem_alpha'])
    memory_out = mem + x

    h = jnp.einsum('hc,nct->nht', p['w1'], memory_out) + p['b1'][None, :, None]
    h = prelu(bn(h, p['fc_gamma'], p['fc_beta'], p['fc_mean'], p['fc_var']), p['fc_alpha'])
    y = jnp.einsum('ch,nht->nct', p['w2'], h) + p['b2'][None, :, None]
    y = prelu(bn(y, p['bn_gamma'][opt], p['bn_beta'][opt], p['bn_mean'][opt],
                 p['bn_var'][opt]), p['act_alpha'][opt])
    return y + memory_out


def make_params(key, hidden_size, backbone_memory_size, left, right, dilation):
    C, H = backbone_memory_size, hidden_size
    K = left + right + 1
    ks = jax.random.split(key, 24)
    u = lambda k, s, lo=-0.5, hi=0.5: jax.random.uniform(k, s, jnp.float32, lo, hi)
    return {
        # memory (depthwise conv + BN + PReLU)
        'dw_w': u(ks[0], (C, 1, K)),
        'dw_b': u(ks[1], (C,)),
        'mem_gamma': u(ks[2], (C,), 0.5, 1.5),
        'mem_beta': u(ks[3], (C,)),
        'mem_mean': u(ks[4], (C,)),
        'mem_var': u(ks[5], (C,), 0.5, 1.5),
        'mem_alpha': jnp.float32(0.25),
        # fc_trans: conv1(C->H), BN(H), PReLU, Dropout, conv2(H->C)
        'w1': u(ks[6], (H, C)),
        'b1': u(ks[7], (H,)),
        'fc_gamma': u(ks[8], (H,), 0.5, 1.5),
        'fc_beta': u(ks[9], (H,)),
        'fc_mean': u(ks[10], (H,)),
        'fc_var': u(ks[11], (H,), 0.5, 1.5),
        'fc_alpha': jnp.float32(0.25),
        'w2': u(ks[12], (C, H)),
        'b2': u(ks[13], (C,)),
        # bn0..bn3 / act0..act3
        'bn_gamma': u(ks[14], (4, C), 0.5, 1.5),
        'bn_beta': u(ks[15], (4, C)),
        'bn_mean': u(ks[16], (4, C)),
        'bn_var': u(ks[17], (4, C), 0.5, 1.5),
        'act_alpha': u(ks[18], (4,), 0.1, 0.4),
        'left': left, 'right': right, 'dilation': dilation,
    }


if __name__ == "__main__":
    B, C, H, T = 2, 16, 32, 24
    left, right, dilation = 2, 2, 1
    opt = 1

    key = jax.random.PRNGKey(0)
    kx, kp = jax.random.split(key)
    x = jax.random.normal(kx, (B, C, T), jnp.float32)
    params = make_params(kp, hidden_size=H, backbone_memory_size=C,
                         left=left, right=right, dilation=dilation)

    out = bidfsmn_forward(x, params, opt)
    out = jax.block_until_ready(out)

    ref = reference_forward(x, params, opt)
    assert out.shape == (B, C, T)
    # Tolerance accounts for bf16 MXU operands (f32 accumulation) vs f32 reference.
    assert jnp.allclose(out, ref, rtol=5e-2, atol=1e-1), (
        f"max abs err {jnp.max(jnp.abs(out - ref))}")
    print("KERNEL_OK")
</pallas_src>

<mosaic_0001>
module attributes {stable_mosaic.version = 11 : i64} {
  func.func @_bidfsmn_kernel(%arg0: i32, %arg1: memref<3xf32, #tpu.memory_space<smem>>, %arg2: memref<1x16x128xf32, #tpu.memory_space<vmem>>, %arg3: memref<16x5xf32, #tpu.memory_space<vmem>>, %arg4: memref<16x1xf32, #tpu.memory_space<vmem>>, %arg5: memref<32x16xbf16, #tpu.memory_space<vmem>>, %arg6: memref<32x1xf32, #tpu.memory_space<vmem>>, %arg7: memref<16x32xbf16, #tpu.memory_space<vmem>>, %arg8: memref<16x1xf32, #tpu.memory_space<vmem>>, %arg9: memref<1x16x128xf32, #tpu.memory_space<vmem>>) attributes {dimension_semantics = [#tpu.dimension_semantics<parallel>], iteration_bounds = array<i64: 2>, scalar_prefetch = 0 : i64, scratch_operands = 0 : i64, tpu.core_type = #tpu.core_type<tc>, window_params = [{transform_indices = @transform_0, window_bounds = array<i64: 3>}, {transform_indices = @transform_1, window_bounds = array<i64: 1, 16, 128>}, {pipeline_mode = #tpu.pipeline_mode<synchronous>, transform_indices = @transform_2, window_bounds = array<i64: 16, 5>}, {pipeline_mode = #tpu.pipeline_mode<synchronous>, transform_indices = @transform_3, window_bounds = array<i64: 16, 1>}, {pipeline_mode = #tpu.pipeline_mode<synchronous>, transform_indices = @transform_4, window_bounds = array<i64: 32, 16>}, {pipeline_mode = #tpu.pipeline_mode<synchronous>, transform_indices = @transform_5, window_bounds = array<i64: 32, 1>}, {pipeline_mode = #tpu.pipeline_mode<synchronous>, transform_indices = @transform_6, window_bounds = array<i64: 16, 32>}, {pipeline_mode = #tpu.pipeline_mode<synchronous>, transform_indices = @transform_7, window_bounds = array<i64: 16, 1>}, {transform_indices = @transform_8, window_bounds = array<i64: 1, 16, 128>}]} {
    %c0 = arith.constant 0 : index
    %c0_0 = arith.constant 0 : index
    %c0_1 = arith.constant 0 : index
    %0 = vector.load %arg2[%c0, %c0_0, %c0_1] : memref<1x16x128xf32, #tpu.memory_space<vmem>>, vector<1x16x128xf32>
    %1 = vector.shape_cast %0 : vector<1x16x128xf32> to vector<16x128xf32>
    %c0_2 = arith.constant 0 : index
    %c0_3 = arith.constant 0 : index
    %2 = vector.load %arg3[%c0_2, %c0_3] : memref<16x5xf32, #tpu.memory_space<vmem>>, vector<16x5xf32>
    %3 = tpu.iota {dimensions = array<i32: 1>} : vector<16x128xi32>
    %cst = arith.constant 0.000000e+00 : f32
    %4 = vector.broadcast %cst : f32 to vector<16x128xf32>
    %c2_i32 = arith.constant 2 : i32
    %5 = tpu.dynamic_rotate %1 by %c2_i32 dim 1 : vector<16x128xf32>, i32 -> vector<16x128xf32>
    %c-2_i32 = arith.constant -2 : i32
    %6 = vector.broadcast %c-2_i32 : i32 to vector<16x128xi32>
    %7 = arith.addi %3, %6 : vector<16x128xi32>
    %c0_i32 = arith.constant 0 : i32
    %8 = vector.broadcast %c0_i32 : i32 to vector<16x128xi32>
    %9 = arith.cmpi sge, %7, %8 : vector<16x128xi32>
    %c-2_i32_4 = arith.constant -2 : i32
    %10 = vector.broadcast %c-2_i32_4 : i32 to vector<16x128xi32>
    %11 = arith.addi %3, %10 : vector<16x128xi32>
    %c24_i32 = arith.constant 24 : i32
    %12 = vector.broadcast %c24_i32 : i32 to vector<16x128xi32>
    %13 = arith.cmpi slt, %11, %12 : vector<16x128xi32>
    %14 = arith.andi %9, %13 : vector<16x128xi1>
    %cst_5 = arith.constant 0.000000e+00 : f32
    %15 = vector.broadcast %cst_5 : f32 to vector<16x128xf32>
    %16 = arith.select %14, %5, %15 : vector<16x128xi1>, vector<16x128xf32>
    %17 = vector.extract_strided_slice %2 {offsets = [0, 0], sizes = [16, 1], strides = [1, 1]} : vector<16x5xf32> to vector<16x1xf32>
    %18 = vector.broadcast %17 : vector<16x1xf32> to vector<16x128xf32>
    %19 = arith.mulf %18, %16 : vector<16x128xf32>
    %20 = arith.addf %4, %19 : vector<16x128xf32>
    %c1_i32 = arith.constant 1 : i32
    %21 = tpu.dynamic_rotate %1 by %c1_i32 dim 1 : vector<16x128xf32>, i32 -> vector<16x128xf32>
    %c-1_i32 = arith.constant -1 : i32
    %22 = vector.broadcast %c-1_i32 : i32 to vector<16x128xi32>
    %23 = arith.addi %3, %22 : vector<16x128xi32>
    %c0_i32_6 = arith.constant 0 : i32
    %24 = vector.broadcast %c0_i32_6 : i32 to vector<16x128xi32>
    %25 = arith.cmpi sge, %23, %24 : vector<16x128xi32>
    %c-1_i32_7 = arith.constant -1 : i32
    %26 = vector.broadcast %c-1_i32_7 : i32 to vector<16x128xi32>
    %27 = arith.addi %3, %26 : vector<16x128xi32>
    %c24_i32_8 = arith.constant 24 : i32
    %28 = vector.broadcast %c24_i32_8 : i32 to vector<16x128xi32>
    %29 = arith.cmpi slt, %27, %28 : vector<16x128xi32>
    %30 = arith.andi %25, %29 : vector<16x128xi1>
    %cst_9 = arith.constant 0.000000e+00 : f32
    %31 = vector.broadcast %cst_9 : f32 to vector<16x128xf32>
    %32 = arith.select %30, %21, %31 : vector<16x128xi1>, vector<16x128xf32>
    %33 = vector.extract_strided_slice %2 {offsets = [0, 1], sizes = [16, 1], strides = [1, 1]} : vector<16x5xf32> to vector<16x1xf32>
    %34 = vector.broadcast %33 : vector<16x1xf32> to vector<16x128xf32>
    %35 = arith.mulf %34, %32 : vector<16x128xf32>
    %36 = arith.addf %20, %35 : vector<16x128xf32>
    %37 = vector.extract_strided_slice %2 {offsets = [0, 2], sizes = [16, 1], strides = [1, 1]} : vector<16x5xf32> to vector<16x1xf32>
    %38 = vector.broadcast %37 : vector<16x1xf32> to vector<16x128xf32>
    %39 = arith.mulf %38, %1 : vector<16x128xf32>
    %40 = arith.addf %36, %39 : vector<16x128xf32>
    %c127_i32 = arith.constant 127 : i32
    %41 = tpu.dynamic_rotate %1 by %c127_i32 dim 1 : vector<16x128xf32>, i32 -> vector<16x128xf32>
    %c1_i32_10 = arith.constant 1 : i32
    %42 = vector.broadcast %c1_i32_10 : i32 to vector<16x128xi32>
    %43 = arith.addi %3, %42 : vector<16x128xi32>
    %c0_i32_11 = arith.constant 0 : i32
    %44 = vector.broadcast %c0_i32_11 : i32 to vector<16x128xi32>
    %45 = arith.cmpi sge, %43, %44 : vector<16x128xi32>
    %c1_i32_12 = arith.constant 1 : i32
    %46 = vector.broadcast %c1_i32_12 : i32 to vector<16x128xi32>
    %47 = arith.addi %3, %46 : vector<16x128xi32>
    %c24_i32_13 = arith.constant 24 : i32
    %48 = vector.broadcast %c24_i32_13 : i32 to vector<16x128xi32>
    %49 = arith.cmpi slt, %47, %48 : vector<16x128xi32>
    %50 = arith.andi %45, %49 : vector<16x128xi1>
    %cst_14 = arith.constant 0.000000e+00 : f32
    %51 = vector.broadcast %cst_14 : f32 to vector<16x128xf32>
    %52 = arith.select %50, %41, %51 : vector<16x128xi1>, vector<16x128xf32>
    %53 = vector.extract_strided_slice %2 {offsets = [0, 3], sizes = [16, 1], strides = [1, 1]} : vector<16x5xf32> to vector<16x1xf32>
    %54 = vector.broadcast %53 : vector<16x1xf32> to vector<16x128xf32>
    %55 = arith.mulf %54, %52 : vector<16x128xf32>
    %56 = arith.addf %40, %55 : vector<16x128xf32>
    %c126_i32 = arith.constant 126 : i32
    %57 = tpu.dynamic_rotate %1 by %c126_i32 dim 1 : vector<16x128xf32>, i32 -> vector<16x128xf32>
    %c2_i32_15 = arith.constant 2 : i32
    %58 = vector.broadcast %c2_i32_15 : i32 to vector<16x128xi32>
    %59 = arith.addi %3, %58 : vector<16x128xi32>
    %c0_i32_16 = arith.constant 0 : i32
    %60 = vector.broadcast %c0_i32_16 : i32 to vector<16x128xi32>
    %61 = arith.cmpi sge, %59, %60 : vector<16x128xi32>
    %c2_i32_17 = arith.constant 2 : i32
    %62 = vector.broadcast %c2_i32_17 : i32 to vector<16x128xi32>
    %63 = arith.addi %3, %62 : vector<16x128xi32>
    %c24_i32_18 = arith.constant 24 : i32
    %64 = vector.broadcast %c24_i32_18 : i32 to vector<16x128xi32>
    %65 = arith.cmpi slt, %63, %64 : vector<16x128xi32>
    %66 = arith.andi %61, %65 : vector<16x128xi1>
    %cst_19 = arith.constant 0.000000e+00 : f32
    %67 = vector.broadcast %cst_19 : f32 to vector<16x128xf32>
    %68 = arith.select %66, %57, %67 : vector<16x128xi1>, vector<16x128xf32>
    %69 = vector.extract_strided_slice %2 {offsets = [0, 4], sizes = [16, 1], strides = [1, 1]} : vector<16x5xf32> to vector<16x1xf32>
    %70 = vector.broadcast %69 : vector<16x1xf32> to vector<16x128xf32>
    %71 = arith.mulf %70, %68 : vector<16x128xf32>
    %72 = arith.addf %56, %71 : vector<16x128xf32>
    %c0_20 = arith.constant 0 : index
    %73 = memref.load %arg1[%c0_20] : memref<3xf32, #tpu.memory_space<smem>>
    %c1 = arith.constant 1 : index
    %74 = memref.load %arg1[%c1] : memref<3xf32, #tpu.memory_space<smem>>
    %c2 = arith.constant 2 : index
    %75 = memref.load %arg1[%c2] : memref<3xf32, #tpu.memory_space<smem>>
    %c0_21 = arith.constant 0 : index
    %c0_22 = arith.constant 0 : index
    %76 = vector.load %arg4[%c0_21, %c0_22] : memref<16x1xf32, #tpu.memory_space<vmem>>, vector<16x1xf32>
    %77 = vector.broadcast %76 : vector<16x1xf32> to vector<16x128xf32>
    %78 = arith.addf %72, %77 : vector<16x128xf32>
    %cst_23 = arith.constant 0.000000e+00 : f32
    %79 = vector.broadcast %cst_23 : f32 to vector<16x128xf32>
    %80 = arith.cmpf ogt, %78, %79 : vector<16x128xf32>
    %81 = vector.broadcast %73 : f32 to vector<16x128xf32>
    %82 = arith.mulf %81, %78 : vector<16x128xf32>
    %83 = arith.select %80, %78, %82 : vector<16x128xi1>, vector<16x128xf32>
    %84 = arith.addf %83, %1 : vector<16x128xf32>
    %c0_24 = arith.constant 0 : index
    %c0_25 = arith.constant 0 : index
    %85 = vector.load %arg5[%c0_24, %c0_25] : memref<32x16xbf16, #tpu.memory_space<vmem>>, vector<32x16xbf16>
    %86 = arith.truncf %84 : vector<16x128xf32> to vector<16x128xbf16>
    %cst_26 = arith.constant dense<0.000000e+00> : vector<32x128xf32>
    %87 = tpu.matmul %85, %86, %cst_26 {dimension_numbers = #tpu.dot_dimension_numbers<[1], [0], [0], [1], [0, 0, 1, 1], [], []>} : vector<32x16xbf16>, vector<16x128xbf16>, vector<32x128xf32> -> vector<32x128xf32>
    %c0_27 = arith.constant 0 : index
    %c0_28 = arith.constant 0 : index
    %88 = vector.load %arg6[%c0_27, %c0_28] : memref<32x1xf32, #tpu.memory_space<vmem>>, vector<32x1xf32>
    %89 = vector.broadcast %88 : vector<32x1xf32> to vector<32x128xf32>
    %90 = arith.addf %87, %89 : vector<32x128xf32>
    %cst_29 = arith.constant 0.000000e+00 : f32
    %91 = vector.broadcast %cst_29 : f32 to vector<32x128xf32>
    %92 = arith.cmpf ogt, %90, %91 : vector<32x128xf32>
    %93 = vector.broadcast %74 : f32 to vector<32x128xf32>
    %94 = arith.mulf %93, %90 : vector<32x128xf32>
    %95 = arith.select %92, %90, %94 : vector<32x128xi1>, vector<32x128xf32>
    %c0_30 = arith.constant 0 : index
    %c0_31 = arith.constant 0 : index
    %96 = vector.load %arg7[%c0_30, %c0_31] : memref<16x32xbf16, #tpu.memory_space<vmem>>, vector<16x32xbf16>
    %97 = arith.truncf %95 : vector<32x128xf32> to vector<32x128xbf16>
    %cst_32 = arith.constant dense<0.000000e+00> : vector<16x128xf32>
    %98 = tpu.matmul %96, %97, %cst_32 {dimension_numbers = #tpu.dot_dimension_numbers<[1], [0], [0], [1], [0, 0, 1, 1], [], []>} : vector<16x32xbf16>, vector<32x128xbf16>, vector<16x128xf32> -> vector<16x128xf32>
    %c0_33 = arith.constant 0 : index
    %c0_34 = arith.constant 0 : index
    %99 = vector.load %arg8[%c0_33, %c0_34] : memref<16x1xf32, #tpu.memory_space<vmem>>, vector<16x1xf32>
    %100 = vector.broadcast %99 : vector<16x1xf32> to vector<16x128xf32>
    %101 = arith.addf %98, %100 : vector<16x128xf32>
    %cst_35 = arith.constant 0.000000e+00 : f32
    %102 = vector.broadcast %cst_35 : f32 to vector<16x128xf32>
    %103 = arith.cmpf ogt, %101, %102 : vector<16x128xf32>
    %104 = vector.broadcast %75 : f32 to vector<16x128xf32>
    %105 = arith.mulf %104, %101 : vector<16x128xf32>
    %106 = arith.select %103, %101, %105 : vector<16x128xi1>, vector<16x128xf32>
    %107 = arith.addf %106, %84 : vector<16x128xf32>
    %c0_36 = arith.constant 0 : index
    %c0_37 = arith.constant 0 : index
    %c0_38 = arith.constant 0 : index
    %108 = vector.load %arg9[%c0_36, %c0_37, %c0_38] : memref<1x16x128xf32, #tpu.memory_space<vmem>>, vector<1x16x128xf32>
    %109 = vector.shape_cast %108 : vector<1x16x128xf32> to vector<16x128xf32>
    %110 = vector.shape_cast %107 : vector<16x128xf32> to vector<1x16x128xf32>
    tpu.vector_store %arg9[%c0_36, %c0_37, %c0_38], %110 {strides = array<i32>} : memref<1x16x128xf32, #tpu.memory_space<vmem>>, vector<1x16x128xf32>,
    return
  }
  func.func @transform_0(%arg0: i32) -> i32 {
    %c0_i32 = arith.constant 0 : i32
    %c0_i32_0 = arith.constant 0 : i32
    return %c0_i32 : i32
  }
  func.func @transform_1(%arg0: i32) -> (i32, i32, i32) {
    %c0_i32 = arith.constant 0 : i32
    %c0_i32_0 = arith.constant 0 : i32
    %c0_i32_1 = arith.constant 0 : i32
    return %arg0, %c0_i32, %c0_i32_0 : i32, i32, i32
  }
  func.func @transform_2(%arg0: i32) -> (i32, i32) {
    %c0_i32 = arith.constant 0 : i32
    %c0_i32_0 = arith.constant 0 : i32
    %c0_i32_1 = arith.constant 0 : i32
    return %c0_i32, %c0_i32_0 : i32, i32
  }
  func.func @transform_3(%arg0: i32) -> (i32, i32) {
    %c0_i32 = arith.constant 0 : i32
    %c0_i32_0 = arith.constant 0 : i32
    %c0_i32_1 = arith.constant 0 : i32
    return %c0_i32, %c0_i32_0 : i32, i32
  }
  func.func @transform_4(%arg0: i32) -> (i32, i32) {
    %c0_i32 = arith.constant 0 : i32
    %c0_i32_0 = arith.constant 0 : i32
    %c0_i32_1 = arith.constant 0 : i32
    return %c0_i32, %c0_i32_0 : i32, i32
  }
  func.func @transform_5(%arg0: i32) -> (i32, i32) {
    %c0_i32 = arith.constant 0 : i32
    %c0_i32_0 = arith.constant 0 : i32
    %c0_i32_1 = arith.constant 0 : i32
    return %c0_i32, %c0_i32_0 : i32, i32
  }
  func.func @transform_6(%arg0: i32) -> (i32, i32) {
    %c0_i32 = arith.constant 0 : i32
    %c0_i32_0 = arith.constant 0 : i32
    %c0_i32_1 = arith.constant 0 : i32
    return %c0_i32, %c0_i32_0 : i32, i32
  }
  func.func @transform_7(%arg0: i32) -> (i32, i32) {
    %c0_i32 = arith.constant 0 : i32
    %c0_i32_0 = arith.constant 0 : i32
    %c0_i32_1 = arith.constant 0 : i32
    return %c0_i32, %c0_i32_0 : i32, i32
  }
  func.func @transform_8(%arg0: i32) -> (i32, i32, i32) {
    %c0_i32 = arith.constant 0 : i32
    %c0_i32_0 = arith.constant 0 : i32
    %c0_i32_1 = arith.constant 0 : i32
    return %arg0, %c0_i32, %c0_i32_0 : i32, i32, i32
  }
}

</mosaic_0001>

<llo_original>
// kernel: tpu_custom_call.1
$region0: #{tpu_custom_call.1}
  #allocation0 [shape = 'u32[]', space=smem, size = 0x4, offset = 0x4, fixed_abs, tag = 'smem constant byte address 0x4 - core index']
  #allocation1 [shape = 'u32[72,128]{1,0:T(1,128)}', space=vmem, size = 0x9000, scoped, tag = 'internal scratch']
  %s0 = inlined_call_operand.vmem [shape: f32[3], index: 0, kind: input, shape index: {}]
  %s1 = inlined_call_operand.vmem [shape: f32[2,16,128], index: 1, kind: input, shape index: {}]
  %s2 = inlined_call_operand.vmem [shape: f32[16,5], index: 2, kind: input, shape index: {}]
  %s3 = inlined_call_operand.vmem [shape: f32[16,1], index: 3, kind: input, shape index: {}]
  %s4 = inlined_call_operand.vmem [shape: bf16[32,16], index: 4, kind: input, shape index: {}]
  %s5 = inlined_call_operand.vmem [shape: f32[32,1], index: 5, kind: input, shape index: {}]
  %s6 = inlined_call_operand.vmem [shape: bf16[16,32], index: 6, kind: input, shape index: {}]
  %s7 = inlined_call_operand.vmem [shape: f32[16,1], index: 7, kind: input, shape index: {}]
  %s8 = inlined_call_operand.hbm [shape: f32[2,16,128], index: 8, kind: output, shape index: {}]
  %s9 = sld [smem:[#allocation0]]
  $region69: #{tpu_custom_call.1} parent=0
    _
  %s11 = ssub.s32 1, %s9
  %s12 = scalar_select 0, %s11, %s9
  $region1: #{tpu_custom_call.1} parent=0
    #allocation2 [shape = 'u8[512]{0}', space=smem, size = 0x200, scoped, tag = 'input window, operand 0, single buffered']
    #allocation3 [shape = 's32[2]{0}', space=sflag, size = 0x8, scoped, tag = 'scoped memory for tpu_custom_call.1']
    #allocation4 [shape = 's32[2]{0}', space=sflag, size = 0x8, scoped, tag = 'scoped memory for tpu_custom_call.1']
    #allocation5 [shape = 'u8[16384]{0}', space=vmem, size = 0x4000, scoped, tag = 'output window, operand 0']
    %13 = vsyncpa [#allocation4], 0
    %14 = vsyncpa [#allocation3], 0
    %s15 = scalar_lea.sflag [#allocation3], 1
    %16 = vsyncpa %s15, 0
    loop: start=0, step=1, limit=4
    $region2: #{tpu_custom_call.1} parent=1 // loop_pre_header
      _
    $region3: #{tpu_custom_call.1} parent=1 // loop_header
      %s18 = sphi 0, %s22
      %p19 = scmp.ge.s32.totalorder %s18, 4
      %s26 = sphi 0, %s26
      %s28 = sphi 0, %s26
      %s29 = sphi 0, %s28
      %s43 = sphi 0, %s29
      %s49 = sphi 0, %s51
      %s52 = sphi 0, %s49
      %s53 = sphi 0, %s52
      %s69 = sphi 0, %s53
      %s73 = sphi 0, %s73
      %s75 = sphi 0, %s73
      %s76 = sphi 0, %s75
      %s90 = sphi 0, %s76
      %s94 = sphi 0, %s94
      %s96 = sphi 0, %s94
      %s97 = sphi 0, %s96
      %s111 = sphi 0, %s97
      %s115 = sphi 0, %s115
      %s117 = sphi 0, %s115
      %s118 = sphi 0, %s117
      %s132 = sphi 0, %s118
      %s136 = sphi 0, %s136
      %s138 = sphi 0, %s136
      %s139 = sphi 0, %s138
      %s153 = sphi 0, %s139
      %s157 = sphi 0, %s157
      %s159 = sphi 0, %s157
      %s160 = sphi 0, %s159
      %s174 = sphi 0, %s160
      %s178 = sphi 0, %s178
      %s180 = sphi 0, %s178
      %s181 = sphi 0, %s180
      %s195 = sphi 0, %s181
      %s201 = sphi 0, %s203
      %s204 = sphi 0, %s201
      %s205 = sphi 0, %s204
      %s221 = sphi 0, %s205
    $region4: #{tpu_custom_call.1} parent=1 // loop_header_branch
      %21 = sbr.rel (%p19) target = $region8
    $region5: #{tpu_custom_call.1} parent=1 // loop_body
      %s23 = ssub.s32 %s18, 1
      %s24 = ssub.s32 %s18, 2
      %s25 = sadd.s32 %s18, 1
      %s27 = sadd.s32 %s26, 1
      %p30 = scmp.eq.s32.totalorder %s18, 1
      %p31 = scmp.ne.s32.totalorder %s26, %s28
      %p32 = scmp.eq.s32.totalorder %s18, 0
      %p33 = por %p31, %p32
      %p34 = scmp.ne.s32.totalorder %s26, %s28
      %p35 = scmp.eq.s32.totalorder %s23, 1
      %p36 = por %p34, %p35
      %p37 = scmp.ne.s32.totalorder %s28, %s29
      %p38 = scmp.eq.s32.totalorder %s23, 0
      %p39 = por %p37, %p38
      %p40 = scmp.ne.s32.totalorder %s28, %s29
      %p41 = scmp.eq.s32.totalorder %s24, 1
      %p42 = por %p40, %p41
      %p44 = scmp.ne.s32.totalorder %s29, %s43
      %p45 = scmp.eq.s32.totalorder %s24, 0
      %p46 = por %p44, %p45
      %s47 = ssub.s32 %s18, %s25
      %p48 = scmp.eq.s32.totalorder %s47, 0
      %s50 = sadd.s32 %s49, 1
      %s51 = scalar_select %p48, %s49, %s50
      %p54 = pneg %p48
      %p55 = scmp.eq.s32.totalorder %s18, 1
      %p56 = por %p54, %p55
      %p57 = scmp.ne.s32.totalorder %s49, %s52
      %p58 = scmp.eq.s32.totalorder %s18, 0
      %p59 = por %p57, %p58
      %p60 = scmp.ne.s32.totalorder %s49, %s52
      %p61 = scmp.eq.s32.totalorder %s23, 1
      %p62 = por %p60, %p61
      %p63 = scmp.ne.s32.totalorder %s52, %s53
      %p64 = scmp.eq.s32.totalorder %s23, 0
      %p65 = por %p63, %p64
      %p66 = scmp.ne.s32.totalorder %s52, %s53
      %p67 = scmp.eq.s32.totalorder %s24, 1
      %p68 = por %p66, %p67
      %p70 = scmp.ne.s32.totalorder %s53, %s69
      %p71 = scmp.eq.s32.totalorder %s24, 0
      %p72 = por %p70, %p71
      %s74 = sadd.s32 %s73, 1
      %p77 = scmp.eq.s32.totalorder %s18, 1
      %p78 = scmp.ne.s32.totalorder %s73, %s75
      %p79 = scmp.eq.s32.totalorder %s18, 0
      %p80 = por %p78, %p79
      %p81 = scmp.ne.s32.totalorder %s73, %s75
      %p82 = scmp.eq.s32.totalorder %s23, 1
      %p83 = por %p81, %p82
      %p84 = scmp.ne.s32.totalorder %s75, %s76
      %p85 = scmp.eq.s32.totalorder %s23, 0
      %p86 = por %p84, %p85
      %p87 = scmp.ne.s32.totalorder %s75, %s76
      %p88 = scmp.eq.s32.totalorder %s24, 1
      %p89 = por %p87, %p88
      %p91 = scmp.ne.s32.totalorder %s76, %s90
      %p92 = scmp.eq.s32.totalorder %s24, 0
      %p93 = por %p91, %p92
      %s95 = sadd.s32 %s94, 1
      %p98 = scmp.eq.s32.totalorder %s18, 1
      %p99 = scmp.ne.s32.totalorder %s94, %s96
      %p100 = scmp.eq.s32.totalorder %s18, 0
      %p101 = por %p99, %p100
      %p102 = scmp.ne.s32.totalorder %s94, %s96
      %p103 = scmp.eq.s32.totalorder %s23, 1
      %p104 = por %p102, %p103
      %p105 = scmp.ne.s32.totalorder %s96, %s97
      %p106 = scmp.eq.s32.totalorder %s23, 0
      %p107 = por %p105, %p106
      %p108 = scmp.ne.s32.totalorder %s96, %s97
      %p109 = scmp.eq.s32.totalorder %s24, 1
      %p110 = por %p108, %p109
      %p112 = scmp.ne.s32.totalorder %s97, %s111
      %p113 = scmp.eq.s32.totalorder %s24, 0
      %p114 = por %p112, %p113
      %s116 = sadd.s32 %s115, 1
      %p119 = scmp.eq.s32.totalorder %s18, 1
      %p120 = scmp.ne.s32.totalorder %s115, %s117
      %p121 = scmp.eq.s32.totalorder %s18, 0
      %p122 = por %p120, %p121
      %p123 = scmp.ne.s32.totalorder %s115, %s117
      %p124 = scmp.eq.s32.totalorder %s23, 1
      %p125 = por %p123, %p124
      %p126 = scmp.ne.s32.totalorder %s117, %s118
      %p127 = scmp.eq.s32.totalorder %s23, 0
      %p128 = por %p126, %p127
      %p129 = scmp.ne.s32.totalorder %s117, %s118
      %p130 = scmp.eq.s32.totalorder %s24, 1
      %p131 = por %p129, %p130
      %p133 = scmp.ne.s32.totalorder %s118, %s132
      %p134 = scmp.eq.s32.totalorder %s24, 0
      %p135 = por %p133, %p134
      %s137 = sadd.s32 %s136, 1
      %p140 = scmp.eq.s32.totalorder %s18, 1
      %p141 = scmp.ne.s32.totalorder %s136, %s138
      %p142 = scmp.eq.s32.totalorder %s18, 0
      %p143 = por %p141, %p142
      %p144 = scmp.ne.s32.totalorder %s136, %s138
      %p145 = scmp.eq.s32.totalorder %s23, 1
      %p146 = por %p144, %p145
      %p147 = scmp.ne.s32.totalorder %s138, %s139
      %p148 = scmp.eq.s32.totalorder %s23, 0
      %p149 = por %p147, %p148
      %p150 = scmp.ne.s32.totalorder %s138, %s139
      %p151 = scmp.eq.s32.totalorder %s24, 1
      %p152 = por %p150, %p151
      %p154 = scmp.ne.s32.totalorder %s139, %s153
      %p155 = scmp.eq.s32.totalorder %s24, 0
      %p156 = por %p154, %p155
      %s158 = sadd.s32 %s157, 1
      %p161 = scmp.eq.s32.totalorder %s18, 1
      %p162 = scmp.ne.s32.totalorder %s157, %s159
      %p163 = scmp.eq.s32.totalorder %s18, 0
      %p164 = por %p162, %p163
      %p165 = scmp.ne.s32.totalorder %s157, %s159
      %p166 = scmp.eq.s32.totalorder %s23, 1
      %p167 = por %p165, %p166
      %p168 = scmp.ne.s32.totalorder %s159, %s160
      %p169 = scmp.eq.s32.totalorder %s23, 0
      %p170 = por %p168, %p169
      %p171 = scmp.ne.s32.totalorder %s159, %s160
      %p172 = scmp.eq.s32.totalorder %s24, 1
      %p173 = por %p171, %p172
      %p175 = scmp.ne.s32.totalorder %s160, %s174
      %p176 = scmp.eq.s32.totalorder %s24, 0
      %p177 = por %p175, %p176
      %s179 = sadd.s32 %s178, 1
      %p182 = scmp.eq.s32.totalorder %s18, 1
      %p183 = scmp.ne.s32.totalorder %s178, %s180
      %p184 = scmp.eq.s32.totalorder %s18, 0
      %p185 = por %p183, %p184
      %p186 = scmp.ne.s32.totalorder %s178, %s180
      %p187 = scmp.eq.s32.totalorder %s23, 1
      %p188 = por %p186, %p187
      %p189 = scmp.ne.s32.totalorder %s180, %s181
      %p190 = scmp.eq.s32.totalorder %s23, 0
      %p191 = por %p189, %p190
      %p192 = scmp.ne.s32.totalorder %s180, %s181
      %p193 = scmp.eq.s32.totalorder %s24, 1
      %p194 = por %p192, %p193
      %p196 = scmp.ne.s32.totalorder %s181, %s195
      %p197 = scmp.eq.s32.totalorder %s24, 0
      %p198 = por %p196, %p197
      %s199 = ssub.s32 %s18, %s25
      %p200 = scmp.eq.s32.totalorder %s199, 0
      %s202 = sadd.s32 %s201, 1
      %s203 = scalar_select %p200, %s201, %s202
      %p206 = pneg %p200
      %p207 = scmp.eq.s32.totalorder %s18, 1
      %p208 = por %p206, %p207
      %p209 = scmp.ne.s32.totalorder %s201, %s204
      %p210 = scmp.eq.s32.totalorder %s18, 0
      %p211 = por %p209, %p210
      %p212 = scmp.ne.s32.totalorder %s201, %s204
      %p213 = scmp.eq.s32.totalorder %s23, 1
      %p214 = por %p212, %p213
      %p215 = scmp.ne.s32.totalorder %s204, %s205
      %p216 = scmp.eq.s32.totalorder %s23, 0
      %p217 = por %p215, %p216
      %p218 = scmp.ne.s32.totalorder %s204, %s205
      %p219 = scmp.eq.s32.totalorder %s24, 1
      %p220 = por %p218, %p219
      %p222 = scmp.ne.s32.totalorder %s205, %s221
      %p223 = scmp.eq.s32.totalorder %s24, 0
      %p224 = por %p222, %p223
      %p225 = scmp.le.s32.totalorder 1, %s18
      %p226 = scmp.lt.s32.totalorder %s18, 3
      %p227 = pnand %p225, %p226
      %p228 = pneg %p227
      // Predicated region
      $region9: #{tpu_custom_call.1} parent=5 // pred_check
        _
      $region10: #{tpu_custom_call.1} parent=5 // pred_check_branch
        %230 = sbr.rel (%p227) target = $region12
      $region11: #{tpu_custom_call.1} parent=5 // pred_region
        %s231 = ssub.s32 %s18, 1
        // Predicated region
        $region13: #{tpu_custom_call.1} parent=11 // pred_check
          %p232 = pneg %p39
        $region14: #{tpu_custom_call.1} parent=11 // pred_check_branch
          %234 = sbr.rel (%p232) target = $region16
        $region15: #{tpu_custom_call.1} parent=11 // pred_region
          %236 = vsyncadd [#allocation4], 0
          %s238 = sshll.u32 %s0, 4
          %s239 = int_to_ptr.vmem [resolvable:$true] %s238
          %241 = dma.vmem_to_smem %s239, 16, [#allocation2], [#allocation4]
        $region16: #{tpu_custom_call.1} parent=11 // pred_fallthru
          _
        // Predicated region
        $region17: #{tpu_custom_call.1} parent=11 // pred_check
          %p242 = pneg %p86
        $region18: #{tpu_custom_call.1} parent=11 // pred_check_branch
          %244 = sbr.rel (%p242) target = $region20
        $region19: #{tpu_custom_call.1} parent=11 // pred_region
          _
        $region20: #{tpu_custom_call.1} parent=11 // pred_fallthru
          _
        // Predicated region
        $region21: #{tpu_custom_call.1} parent=11 // pred_check
          %p245 = pneg %p107
        $region22: #{tpu_custom_call.1} parent=11 // pred_check_branch
          %247 = sbr.rel (%p245) target = $region24
        $region23: #{tpu_custom_call.1} parent=11 // pred_region
          _
        $region24: #{tpu_custom_call.1} parent=11 // pred_fallthru
          _
        // Predicated region
        $region25: #{tpu_custom_call.1} parent=11 // pred_check
          %p248 = pneg %p128
        $region26: #{tpu_custom_call.1} parent=11 // pred_check_branch
          %250 = sbr.rel (%p248) target = $region28
        $region27: #{tpu_custom_call.1} parent=11 // pred_region
          _
        $region28: #{tpu_custom_call.1} parent=11 // pred_fallthru
          _
        // Predicated region
        $region29: #{tpu_custom_call.1} parent=11 // pred_check
          %p251 = pneg %p149
        $region30: #{tpu_custom_call.1} parent=11 // pred_check_branch
          %253 = sbr.rel (%p251) target = $region32
        $region31: #{tpu_custom_call.1} parent=11 // pred_region
          _
        $region32: #{tpu_custom_call.1} parent=11 // pred_fallthru
          _
        // Predicated region
        $region33: #{tpu_custom_call.1} parent=11 // pred_check
          %p254 = pneg %p170
        $region34: #{tpu_custom_call.1} parent=11 // pred_check_branch
          %256 = sbr.rel (%p254) target = $region36
        $region35: #{tpu_custom_call.1} parent=11 // pred_region
          _
        $region36: #{tpu_custom_call.1} parent=11 // pred_fallthru
          _
        // Predicated region
        $region37: #{tpu_custom_call.1} parent=11 // pred_check
          %p257 = pneg %p191
        $region38: #{tpu_custom_call.1} parent=11 // pred_check_branch
          %259 = sbr.rel (%p257) target = $region40
        $region39: #{tpu_custom_call.1} parent=11 // pred_region
          _
        $region40: #{tpu_custom_call.1} parent=11 // pred_fallthru
          _
      $region12: #{tpu_custom_call.1} parent=5 // pred_fallthru
        _
      %p260 = scmp.lt.s32.totalorder %s18, 2
      // Predicated region
      $region41: #{tpu_custom_call.1} parent=5 // pred_check
        %p261 = pneg %p260
      $region42: #{tpu_custom_call.1} parent=5 // pred_check_branch
        %263 = sbr.rel (%p261) target = $region44
      $region43: #{tpu_custom_call.1} parent=5 // pred_region
        // Predicated region
        $region45: #{tpu_custom_call.1} parent=43 // pred_check
          %p264 = pneg %p59
        $region46: #{tpu_custom_call.1} parent=43 // pred_check_branch
          %266 = sbr.rel (%p264) target = $region48
        $region47: #{tpu_custom_call.1} parent=43 // pred_region
          %p267 = scmp.lt.s32.totalorder %s18, 1
          %s268 = scalar_select %p267, %s18, 1
          %s269 = smul.addr %s268, 2
          %s270 = smul.addr %s269, 8
          %s271 = scalar_lea.vmem %s1, %s270
        $region48: #{tpu_custom_call.1} parent=43 // pred_fallthru
          _
      $region44: #{tpu_custom_call.1} parent=5 // pred_fallthru
        _
      %p272 = scmp.le.s32.totalorder 1, %s18
      %p273 = scmp.lt.s32.totalorder %s18, 3
      %p274 = pnand %p272, %p273
      %p275 = pneg %p274
      // Predicated region
      $region49: #{tpu_custom_call.1} parent=5 // pred_check
        _
      $region50: #{tpu_custom_call.1} parent=5 // pred_check_branch
        %277 = sbr.rel (%p274) target = $region52
      $region51: #{tpu_custom_call.1} parent=5 // pred_region
        %s278 = ssub.s32 %s18, 1
        // Predicated region
        $region53: #{tpu_custom_call.1} parent=51 // pred_check
          %p279 = pneg %p39
        $region54: #{tpu_custom_call.1} parent=51 // pred_check_branch
          %281 = sbr.rel (%p279) target = $region56
        $region55: #{tpu_custom_call.1} parent=51 // pred_region
          %283 = dma.done [#allocation4], 16
        $region56: #{tpu_custom_call.1} parent=51 // pred_fallthru
          _
        %284 = sfence
        %p285 = pneg %p39
        %p286 = pneg %p36
        %p287 = scmp.lt.s32.totalorder %s23, 1
        %s288 = scalar_select %p287, %s23, 1
        %s289 = smul.addr %s288, 2
        %s290 = smul.addr %s289, 8
        %s291 = scalar_lea.vmem %s1, %s290
        %p292 = pneg %p65
        %p293 = pneg %p62
        %p294 = pneg %p86
        %p295 = pneg %p83
        %p296 = pneg %p107
        %p297 = pneg %p104
        %p298 = pneg %p128
        %p299 = pneg %p125
        %p300 = pneg %p149
        %p301 = pneg %p146
        %p302 = pneg %p170
        %p303 = pneg %p167
        %p304 = pneg %p191
        %p305 = pneg %p188
        %p306 = pneg %p217
        %p307 = pneg %p214
        %s308 = sand.u32 %s204, 1
        %s309 = scalar_lea.sflag [#allocation3], %s308
        %s310 = sand.u32 %s204, 1
        %s311 = smul.addr %s310, 16
        %s312 = scalar_lea.vmem [#allocation5], %s311
        %p313 = scmp.lt.s32.totalorder %s23, 1
        %s314 = scalar_select %p313, %s23, 1
        %s315 = smul.addr %s314, 2
        %s316 = smul.addr %s315, 8
        %s317 = scalar_lea.vmem %s1, %s316
        %v319 = vld [vmem:[%s317] sm:$0xff]
        %v320 = vld [vmem:[%s317 + $0x8] sm:$0xff]
        %v321 = vld [vmem:[%s2] sm:$0xff]
        %v322 = vld [vmem:[%s2 + $0x8] sm:$0xff]
        %v323 = vlaneseq
        %v324 = vand.u32 %v323, 127
        %325 = vrot.lane.b32.xlu0 %v319, 2
        %v326 = vpop.permute.xlu0 %325
        %327 = vrot.lane.b32.xlu0 %v320, 2
        %v328 = vpop.permute.xlu0 %327
        %v329 = vadd.s32 %v324, 4294967294
        %vm330 = vcmp.ge.s32.totalorder %v329, 0
        %vm331 = vcmp.lt.s32.totalorder %v329, 24
        %vm332 = vmand %vm330, %vm331
        %v333 = vsel %vm332, %v326, 0.0
        %v334 = vsel %vm332, %v328, 0.0
        %336 = vset.pattern.permute.xlu0 0
        %337 = vperm.xlu0 %336, %v321
        %v338 = vpop.permute.xlu0 %337
        %341 = vset.pattern.permute.xlu0 0
        %342 = vperm.xlu0 %341, %v322
        %v343 = vpop.permute.xlu0 %342
        %v345 = vmul.f32 %v338, %v333
        %v346 = vmul.f32 %v343, %v334
        %v347 = vadd.f32 %v345, 0.0
        %v348 = vadd.f32 %v346, 0.0
        %349 = vrot.lane.b32.xlu0 %v319, 1
        %v350 = vpop.permute.xlu0 %349
        %351 = vrot.lane.b32.xlu0 %v320, 1
        %v352 = vpop.permute.xlu0 %351
        %v353 = vadd.s32 %v324, 4294967295
        %vm354 = vcmp.ge.s32.totalorder %v353, 0
        %vm355 = vcmp.lt.s32.totalorder %v353, 24
        %vm356 = vmand %vm354, %vm355
        %v357 = vsel %vm356, %v350, 0.0
        %v358 = vsel %vm356, %v352, 0.0
        %359 = vset.pattern.permute.xlu0 1
        %360 = vperm.xlu0 %359, %v321
        %v361 = vpop.permute.xlu0 %360
        %363 = vset.pattern.permute.xlu0 1
        %364 = vperm.xlu0 %363, %v322
        %v365 = vpop.permute.xlu0 %364
        %v367 = vmul.f32 %v361, %v357
        %v368 = vmul.f32 %v365, %v358
        %v369 = vadd.f32 %v347, %v367
        %v370 = vadd.f32 %v348, %v368
        %371 = vset.pattern.permute.xlu0 2
        %372 = vperm.xlu0 %371, %v321
        %v373 = vpop.permute.xlu0 %372
        %375 = vset.pattern.permute.xlu0 2
        %376 = vperm.xlu0 %375, %v322
        %v377 = vpop.permute.xlu0 %376
        %v379 = vmul.f32 %v373, %v319
        %v380 = vmul.f32 %v377, %v320
        %v381 = vadd.f32 %v369, %v379
        %v382 = vadd.f32 %v370, %v380
        %383 = vrot.lane.b32.xlu0 %v319, 127
        %v384 = vpop.permute.xlu0 %383
        %385 = vrot.lane.b32.xlu0 %v320, 127
        %v386 = vpop.permute.xlu0 %385
        %v387 = vadd.s32 %v324, 1
        %vm388 = vcmp.ge.s32.totalorder %v387, 0
        %vm389 = vcmp.lt.s32.totalorder %v387, 24
        %vm390 = vmand %vm388, %vm389
        %v391 = vsel %vm390, %v384, 0.0
        %v392 = vsel %vm390, %v386, 0.0
        %393 = vset.pattern.permute.xlu0 3
        %394 = vperm.xlu0 %393, %v321
        %v395 = vpop.permute.xlu0 %394
        %397 = vset.pattern.permute.xlu0 3
        %398 = vperm.xlu0 %397, %v322
        %v399 = vpop.permute.xlu0 %398
        %v401 = vmul.f32 %v395, %v391
        %v402 = vmul.f32 %v399, %v392
        %v403 = vadd.f32 %v381, %v401
        %v404 = vadd.f32 %v382, %v402
        %405 = vrot.lane.b32.xlu0 %v319, 126
        %v406 = vpop.permute.xlu0 %405
        %407 = vrot.lane.b32.xlu0 %v320, 126
        %v408 = vpop.permute.xlu0 %407
        %v409 = vadd.s32 %v324, 2
        %vm410 = vcmp.ge.s32.totalorder %v409, 0
        %vm411 = vcmp.lt.s32.totalorder %v409, 24
        %vm412 = vmand %vm410, %vm411
        %v413 = vsel %vm412, %v406, 0.0
        %v414 = vsel %vm412, %v408, 0.0
        %415 = vset.pattern.permute.xlu0 4
        %416 = vperm.xlu0 %415, %v321
        %v417 = vpop.permute.xlu0 %416
        %419 = vset.pattern.permute.xlu0 4
        %420 = vperm.xlu0 %419, %v322
        %v421 = vpop.permute.xlu0 %420
        %v423 = vmul.f32 %v417, %v413
        %v424 = vmul.f32 %v421, %v414
        %v425 = vadd.f32 %v403, %v423
        %v426 = vadd.f32 %v404, %v424
        %s427 = sld [smem:[#allocation2]]
        %s428 = sld [smem:[#allocation2 + $0x1]]
        %s429 = sld [smem:[#allocation2 + $0x2]]
        %v430 = vld [vmem:[%s3] sm:$0xff]
        %v431 = vld [vmem:[%s3 + $0x8] sm:$0xff]
        %433 = vset.pattern.permute.xlu0 0
        %434 = vperm.xlu0 %433, %v430
        %v435 = vpop.permute.xlu0 %434
        %438 = vset.pattern.permute.xlu0 0
        %439 = vperm.xlu0 %438, %v431
        %v440 = vpop.permute.xlu0 %439
        %v442 = vadd.f32 %v425, %v435
        %v443 = vadd.f32 %v426, %v440
        %vm444 = vcmp.gt.f32.partialorder %v442, 0.0
        %vm445 = vcmp.gt.f32.partialorder %v443, 0.0
        %v446 = vstv %s427
        %v447 = vmul.f32 %v446, %v442
        %v448 = vmul.f32 %v446, %v443
        %v449 = vsel %vm444, %v442, %v447
        %v450 = vsel %vm445, %v443, %v448
        %v451 = vadd.f32 %v449, %v319
        %v452 = vadd.f32 %v450, %v320
        %v453 = vld [vmem:[%s4] sm:$0xf]
        %v454 = vld [vmem:[%s4 + $0x4] sm:$0xf]
        %v455 = vld [vmem:[%s4 + $0x8] sm:$0xf]
        %v456 = vld [vmem:[%s4 + $0xc] sm:$0xf]
        %v457 = vpack.c.bf16 %v452, %v451
        %v458 = vld [vmem:[%s5] sm:$0xff]
        %v459 = vld [vmem:[%s5 + $0x8] sm:$0xff]
        %v460 = vld [vmem:[%s5 + $0x10] sm:$0xff]
        %v461 = vld [vmem:[%s5 + $0x18] sm:$0xff]
        %463 = vset.pattern.permute.xlu0 0
        %464 = vperm.xlu0 %463, %v458
        %v465 = vpop.permute.xlu0 %464
        %468 = vset.pattern.permute.xlu0 0
        %469 = vperm.xlu0 %468, %v459
        %v470 = vpop.permute.xlu0 %469
        %473 = vset.pattern.permute.xlu0 0
        %474 = vperm.xlu0 %473, %v460
        %v475 = vpop.permute.xlu0 %474
        %478 = vset.pattern.permute.xlu0 0
        %479 = vperm.xlu0 %478, %v461
        %v480 = vpop.permute.xlu0 %479
        %v486 = vunpack.c.l.b16 %v453
        %v487 = vunpack.c.l.b16 %v454
        %v488 = vunpack.c.l.b16 %v455
        %v489 = vunpack.c.l.b16 %v456
        %v490 = vpack.c.b16 %v487, %v486
        %v491 = vpack.c.b16 %v489, %v488
        %vm492 = vcmask 130048
        %v494 = vsel %vm492, %v490, 0
        %v497 = vsel %vm492, %v491, 0
        %499 = vmatpush.bf16.msra.mxu0 0
        %500 = vmatpush.bf16.msra.mxu0 0
        %501 = vmatpush.bf16.msra.mxu0 0
        %502 = vmatpush.bf16.msra.mxu0 0
        %503 = vmatpush.bf16.msra.mxu0 0
        %504 = vmatpush.bf16.msra.mxu0 0
        %505 = vmatpush.bf16.msra.mxu0 0
        %506 = vmatpush.bf16.msra.mxu0 %v457
        %507 = vmatmul.bf16.gmra.mxu0 %v494
        %v508 = vpop.f32.mrf.mxu0
        %v509 = vadd.f32 %v465, %v508
        %v510 = vpop.f32.mrf.mxu0
        %v511 = vadd.f32 %v470, %v510
        %512 = vmatmul.bf16.gmra.mxu0 %v497
        %v513 = vpop.f32.mrf.mxu0
        %v514 = vadd.f32 %v475, %v513
        %v515 = vpop.f32.mrf.mxu0
        %v516 = vadd.f32 %v480, %v515
        %517 = vdwg.mxu0
        %vm518 = vcmp.gt.f32.partialorder %v509, 0.0
        %vm519 = vcmp.gt.f32.partialorder %v511, 0.0
        %vm520 = vcmp.gt.f32.partialorder %v514, 0.0
        %vm521 = vcmp.gt.f32.partialorder %v516, 0.0
        %v522 = vstv %s428
        %v523 = vmul.f32 %v522, %v509
        %v524 = vmul.f32 %v522, %v511
        %v525 = vmul.f32 %v522, %v514
        %v526 = vmul.f32 %v522, %v516
        %v527 = vsel %vm518, %v509, %v523
        %v528 = vsel %vm519, %v511, %v524
        %v529 = vsel %vm520, %v514, %v525
        %v530 = vsel %vm521, %v516, %v526
        %v531 = vld [vmem:[%s6] sm:$0xf]
        %v532 = vld [vmem:[%s6 + $0x4] sm:$0xf]
        %v533 = vpack.c.bf16 %v528, %v527
        %v534 = vpack.c.bf16 %v530, %v529
        %v535 = vld [vmem:[%s7] sm:$0xff]
        %v536 = vld [vmem:[%s7 + $0x8] sm:$0xff]
        %538 = vset.pattern.permute.xlu0 0
        %539 = vperm.xlu0 %538, %v535
        %v540 = vpop.permute.xlu0 %539
        %543 = vset.pattern.permute.xlu0 0
        %544 = vperm.xlu0 %543, %v536
        %v545 = vpop.permute.xlu0 %544
        %v549 = vunpack.c.l.b16 %v531
        %v550 = vunpack.c.l.b16 %v532
        %v551 = vpack.c.b16 %v550, %v549
        %vm552 = vcmask 261120
        %v554 = vsel %vm552, %v551, 0
        %556 = vmatpush.bf16.msra.mxu0 0
        %557 = vmatpush.bf16.msra.mxu0 0
        %558 = vmatpush.bf16.msra.mxu0 0
        %559 = vmatpush.bf16.msra.mxu0 0
        %560 = vmatpush.bf16.msra.mxu0 0
        %561 = vmatpush.bf16.msra.mxu0 0
        %562 = vmatpush.bf16.msra.mxu0 %v534
        %563 = vmatpush.bf16.msra.mxu0 %v533
        %564 = vmatmul.bf16.gmra.mxu0 %v554
        %v565 = vpop.f32.mrf.mxu0
        %v566 = vadd.f32 %v540, %v565
        %v567 = vpop.f32.mrf.mxu0
        %v568 = vadd.f32 %v545, %v567
        %569 = vdwg.mxu0
        %vm570 = vcmp.gt.f32.partialorder %v566, 0.0
        %vm571 = vcmp.gt.f32.partialorder %v568, 0.0
        %v572 = vstv %s429
        %v573 = vmul.f32 %v572, %v566
        %v574 = vmul.f32 %v572, %v568
        %v575 = vsel %vm570, %v566, %v573
        %v576 = vsel %vm571, %v568, %v574
        %v577 = vadd.f32 %v575, %v451
        %v578 = vadd.f32 %v576, %v452
        %579 = vst [vmem:[%s312] sm:$0xff] %v577
        %580 = vst [vmem:[%s312 + $0x8] sm:$0xff] %v578
        %s581 = sand.u32 %s204, 1
        %s582 = scalar_lea.sflag [#allocation3], %s581
        %s583 = sand.u32 %s204, 1
        %s584 = smul.addr %s583, 16
        %s585 = scalar_lea.vmem [#allocation5], %s584
        // Predicated region
        $region57: #{tpu_custom_call.1} parent=51 // pred_check
          %p586 = pneg %p214
        $region58: #{tpu_custom_call.1} parent=51 // pred_check_branch
          %588 = sbr.rel (%p586) target = $region60
        $region59: #{tpu_custom_call.1} parent=51 // pred_region
          %590 = vsyncadd %s582, 0
          %s591 = smul.addr %s23, 2
          %s592 = smul.addr %s591, 8
          %s593 = scalar_lea.hbm %s8, %s592
          %s594 = sshll.u32 %s585, 4
          %s595 = int_to_ptr.vmem [resolvable:$true] %s594
          %s596 = sshll.u32 %s593, 4
          %s597 = int_to_ptr.hbm [resolvable:$true] %s596
          %602 = dma.vmem_to_hbm [thread:$0]  %s595, 256, %s597, %s582, 128, 128, 8
        $region60: #{tpu_custom_call.1} parent=51 // pred_fallthru
          _
      $region52: #{tpu_custom_call.1} parent=5 // pred_fallthru
        _
      %p603 = scmp.le.s32.totalorder 2, %s18
      // Predicated region
      $region61: #{tpu_custom_call.1} parent=5 // pred_check
        %p604 = pneg %p603
      $region62: #{tpu_custom_call.1} parent=5 // pred_check_branch
        %606 = sbr.rel (%p604) target = $region64
      $region63: #{tpu_custom_call.1} parent=5 // pred_region
        %s607 = ssub.s32 %s18, 2
        // Predicated region
        $region65: #{tpu_custom_call.1} parent=63 // pred_check
          %p608 = pneg %p220
        $region66: #{tpu_custom_call.1} parent=63 // pred_check_branch
          %610 = sbr.rel (%p608) target = $region68
        $region67: #{tpu_custom_call.1} parent=63 // pred_region
          %s611 = sand.u32 %s205, 1
          %s612 = scalar_lea.sflag [#allocation3], %s611
          %s613 = sand.u32 %s205, 1
          %s614 = smul.addr %s613, 16
          %s615 = scalar_lea.vmem [#allocation5], %s614
          %617 = dma.done %s612, 256
        $region68: #{tpu_custom_call.1} parent=63 // pred_fallthru
          _
      $region64: #{tpu_custom_call.1} parent=5 // pred_fallthru
        _
    $region6: #{tpu_custom_call.1} parent=1 // loop_footer
      %s22 = sadd.s32 1, %s18
    $region7: #{tpu_custom_call.1} parent=1 // loop_footer_branch
      %17 = sbr.rel target = $region3
    $region8: #{tpu_custom_call.1} parent=1 // loop_exit
      _
    %618 = vsyncpa [#allocation3], 1
    %s619 = scalar_lea.sflag [#allocation3], 1
    %620 = vsyncpa %s619, 1
    %621 = vsyncpa [#allocation4], 1
    %s622 = scalar_lea.sflag [#allocation4], 1
    %623 = vsyncpa %s622, 1

</llo_original>
